<compile_context>
chip_gen: v6e
topology: v6e:2x2x1
jax: 0.10.0
libtpu: 0.0.40
codegen_flags: <defaults>
</compile_context>

<pallas_src>
import functools

import jax
import jax.numpy as jnp
from jax import lax
from jax.experimental import pallas as pl
from jax.experimental.pallas import tpu as pltpu

P_DROP = 0.3
_DROP_THRESHOLD = int(round(P_DROP * (1 << 32)))  # keep iff hash_bits >= threshold
_INV_KEEP = 1.0 / (1.0 - P_DROP)


def _round_up(x, m):
    return ((x + m - 1) // m) * m


def _cdiv(a, b):
    return -(-a // b)


def _pad2(a, shape):
    return jnp.pad(a, ((0, shape[0] - a.shape[0]), (0, shape[1] - a.shape[1])))


def _hash_u32(x):
    """2-multiply integer finalizer (lowbias32-style)."""
    x = x ^ (x >> 16)
    x = x * jnp.uint32(0x7FEB352D)
    x = x ^ (x >> 15)
    x = x * jnp.uint32(0x846CA68B)
    x = x ^ (x >> 16)
    return x


def _keep_mask(row_start, seed, shape):
    """Deterministic per-element keep mask from a counter-based uint32 hash.

    Cheap per-row (R,1) and per-column (1,C) hashes are computed on small
    vectors; per-element work is one xor + one 2-multiply finalizer + compare.
    Pure jnp, so the same function is used inside the Pallas kernel and in
    the host-side reference check.
    """
    r, c = shape
    row_start = jnp.asarray(row_start).astype(jnp.uint32)
    seed = jnp.asarray(seed).astype(jnp.uint32)
    rows = lax.broadcasted_iota(jnp.int32, (r, 1), 0).astype(jnp.uint32) + row_start
    cols = lax.broadcasted_iota(jnp.int32, (1, c), 1).astype(jnp.uint32)
    row_h = _hash_u32(rows + seed * jnp.uint32(0x9E3779B9))
    col_h = _hash_u32(cols * jnp.uint32(0x85EBCA6B) + seed)
    bits = _hash_u32(row_h ^ col_h)  # (r, c) via broadcast
    return bits >= jnp.uint32(_DROP_THRESHOLD)


def _mlp_dropout_kernel(seed_ref, x_ref, w1_ref, b1_ref, w2_ref, b2_ref,
                        w3_ref, b3_ref, o_ref, *, training: bool, tile_rows: int):
    # fc1 + ReLU (hidden dim padded to 128; pad columns stay exactly 0).
    h1 = jnp.dot(x_ref[...], w1_ref[...], preferred_element_type=jnp.float32)
    h1 = jnp.maximum(h1 + b1_ref[...], 0.0)

    # fc2 + ReLU (bf16 operands, f32 accumulation).
    h2 = jnp.dot(h1.astype(jnp.bfloat16), w2_ref[...],
                 preferred_element_type=jnp.float32)
    h2 = jnp.maximum(h2 + b2_ref[...], 0.0)

    if training:
        # Inverted dropout, p=0.3: integer-threshold mask; the 1/(1-p) scale
        # commutes through fc3 and is applied after it.
        row_start = pl.program_id(0) * tile_rows
        keep = _keep_mask(row_start, seed_ref[0], h2.shape)
        h2 = jnp.where(keep, h2, 0.0)
        out = jnp.dot(h2.astype(jnp.bfloat16), w3_ref[...],
                      preferred_element_type=jnp.float32)
        out = out * jnp.float32(_INV_KEEP) + b3_ref[...]
    else:
        out = jnp.dot(h2.astype(jnp.bfloat16), w3_ref[...],
                      preferred_element_type=jnp.float32) + b3_ref[...]

    o_ref[...] = out


def prepare_params(params):
    """One-time padding + bf16 cast (hoisted out of the per-call hot path).

    Weights are (in, out) layout, zero-padded to lane multiples of 128 and
    cast to bf16; biases stay f32 (added after the f32-accumulating dot).
    """
    S, F1 = params["w1"].shape
    F2 = params["w2"].shape[1]
    A = params["w3"].shape[1]
    F1P, F2P, AP = _round_up(F1, 128), _round_up(F2, 128), _round_up(A, 128)
    return {
        "w1": _pad2(params["w1"], (S, F1P)).astype(jnp.bfloat16),
        "b1": _pad2(params["b1"], (1, F1P)).astype(jnp.float32),
        "w2": _pad2(params["w2"], (F1P, F2P)).astype(jnp.bfloat16),
        "b2": _pad2(params["b2"], (1, F2P)).astype(jnp.float32),
        "w3": _pad2(params["w3"], (F2P, AP)).astype(jnp.bfloat16),
        "b3": _pad2(params["b3"], (1, AP)).astype(jnp.float32),
    }


def _choose_tile(B, cap):
    """Largest batch tile <= cap, keeping >=2 grid steps when B is big enough
    (so v7x's two TensorCores both get work via the 'parallel' axis)."""
    tiles = max(1, _cdiv(B, cap))
    if tiles == 1 and B >= 1024:
        tiles = 2
    return _round_up(_cdiv(B, tiles), 16)


@functools.partial(jax.jit, static_argnames=("action_size", "training", "tile_cap"))
def dropout_qnetwork_forward(state, prepared, seed, *, action_size,
                             training=True, tile_cap=2048):
    """state: (B, state_size) f32. prepared: output of prepare_params()."""
    B, S = state.shape
    F1P = prepared["w1"].shape[1]
    F2P = prepared["w2"].shape[1]
    AP = prepared["w3"].shape[1]

    TB = _choose_tile(B, tile_cap)
    B_pad = _round_up(B, TB)
    x = state.astype(jnp.bfloat16)
    if B_pad != B:
        x = jnp.pad(x, ((0, B_pad - B), (0, 0)))

    kernel = functools.partial(_mlp_dropout_kernel, training=training, tile_rows=TB)
    seed_arr = jnp.asarray(seed, dtype=jnp.int32).reshape((1,))

    out = pl.pallas_call(
        kernel,
        out_shape=jax.ShapeDtypeStruct((B_pad, AP), jnp.float32),
        grid_spec=pltpu.PrefetchScalarGridSpec(
            num_scalar_prefetch=1,
            grid=(B_pad // TB,),
            in_specs=[
                pl.BlockSpec((TB, S), lambda i, s: (i, 0)),      # state tile (bf16)
                pl.BlockSpec((S, F1P), lambda i, s: (0, 0)),     # w1 (resident, bf16)
                pl.BlockSpec((1, F1P), lambda i, s: (0, 0)),     # b1 (f32)
                pl.BlockSpec((F1P, F2P), lambda i, s: (0, 0)),   # w2 (resident, bf16)
                pl.BlockSpec((1, F2P), lambda i, s: (0, 0)),     # b2 (f32)
                pl.BlockSpec((F2P, AP), lambda i, s: (0, 0)),    # w3 (padded, lane-dense)
                pl.BlockSpec((1, AP), lambda i, s: (0, 0)),      # b3 (f32)
            ],
            out_specs=pl.BlockSpec((TB, AP), lambda i, s: (i, 0)),
        ),
        compiler_params=pltpu.CompilerParams(
            dimension_semantics=("parallel",),
            vmem_limit_bytes=32 * 1024 * 1024,   # big tiles fit on v5e's 16MiB default too
        ),
    )(seed_arr, x, prepared["w1"], prepared["b1"], prepared["w2"],
      prepared["b2"], prepared["w3"], prepared["b3"])

    return out[:B, :action_size]


def init_params(key, state_size, action_size, fc1_units=64, fc2_units=128):
    """Mimics nn.Linear's uniform(-1/sqrt(fan_in), 1/sqrt(fan_in)) init; weights stored as (in, out)."""
    def linear(k, fan_in, fan_out):
        kw, kb = jax.random.split(k)
        bound = 1.0 / jnp.sqrt(fan_in)
        w = jax.random.uniform(kw, (fan_in, fan_out), jnp.float32, -bound, bound)
        b = jax.random.uniform(kb, (1, fan_out), jnp.float32, -bound, bound)
        return w, b

    k1, k2, k3 = jax.random.split(key, 3)
    w1, b1 = linear(k1, state_size, fc1_units)
    w2, b2 = linear(k2, fc1_units, fc2_units)
    w3, b3 = linear(k3, fc2_units, action_size)
    return {"w1": w1, "b1": b1, "w2": w2, "b2": b2, "w3": w3, "b3": b3}


if __name__ == "__main__":
    key = jax.random.PRNGKey(0)
    state_size, action_size, batch = 16, 4, 8
    seed = 1234

    pkey, xkey = jax.random.split(key)
    params = init_params(pkey, state_size, action_size)
    prepared = prepare_params(params)
    state = jax.random.normal(xkey, (batch, state_size), dtype=jnp.float32)

    # train-mode forward (dropout active, matches nn.Module default training state)
    q_train = dropout_qnetwork_forward(state, prepared, seed,
                                       action_size=action_size, training=True)
    # eval-mode forward (dropout = identity)
    q_eval = dropout_qnetwork_forward(state, prepared, seed,
                                      action_size=action_size, training=False)
    jax.block_until_ready((q_train, q_eval))

    # Pure-JAX references, mirroring the kernel's bf16-operand / f32-accum math.
    f32 = jnp.float32
    xb = state.astype(jnp.bfloat16)
    w1b = params["w1"].astype(jnp.bfloat16)
    w2b = params["w2"].astype(jnp.bfloat16)
    w3b = params["w3"].astype(jnp.bfloat16)
    h1 = jnp.maximum(jnp.dot(xb, w1b, preferred_element_type=f32) + params["b1"], 0.0)
    h2 = jnp.maximum(jnp.dot(h1.astype(jnp.bfloat16), w2b,
                             preferred_element_type=f32) + params["b2"], 0.0)
    ref_eval = jnp.dot(h2.astype(jnp.bfloat16), w3b,
                       preferred_element_type=f32) + params["b3"]

    F2 = params["w2"].shape[1]
    F2P = _round_up(F2, 128)
    keep = _keep_mask(0, seed, (batch, F2P))[:, :F2]   # same mask the kernel derives
    h2d = jnp.where(keep, h2, 0.0)
    ref_train = jnp.dot(h2d.astype(jnp.bfloat16), w3b,
                        preferred_element_type=f32) * jnp.float32(_INV_KEEP) + params["b3"]

    assert q_eval.shape == (batch, action_size)
    assert q_train.shape == (batch, action_size)
    assert jnp.allclose(q_eval, ref_eval, atol=2e-3, rtol=2e-3)
    assert jnp.allclose(q_train, ref_train, atol=2e-3, rtol=2e-3)

    print("KERNEL_OK")
</pallas_src>

<mosaic_0001>
module attributes {stable_mosaic.version = 11 : i64} {
  func.func @_mlp_dropout_kernel(%arg0: i32, %arg1: memref<1xi32, #tpu.memory_space<smem>>, %arg2: memref<16x16xbf16, #tpu.memory_space<vmem>>, %arg3: memref<16x128xbf16, #tpu.memory_space<vmem>>, %arg4: memref<1x128xf32, #tpu.memory_space<vmem>>, %arg5: memref<128x128xbf16, #tpu.memory_space<vmem>>, %arg6: memref<1x128xf32, #tpu.memory_space<vmem>>, %arg7: memref<128x128xbf16, #tpu.memory_space<vmem>>, %arg8: memref<1x128xf32, #tpu.memory_space<vmem>>, %arg9: memref<16x128xf32, #tpu.memory_space<vmem>>) attributes {dimension_semantics = [#tpu.dimension_semantics<parallel>], iteration_bounds = array<i64: 1>, scalar_prefetch = 1 : i64, scratch_operands = 0 : i64, tpu.core_type = #tpu.core_type<tc>, window_params = [{transform_indices = @transform_0, window_bounds = array<i64: 16, 16>}, {pipeline_mode = #tpu.pipeline_mode<synchronous>, transform_indices = @transform_1, window_bounds = array<i64: 16, 128>}, {pipeline_mode = #tpu.pipeline_mode<synchronous>, transform_indices = @transform_2, window_bounds = array<i64: 1, 128>}, {pipeline_mode = #tpu.pipeline_mode<synchronous>, transform_indices = @transform_3, window_bounds = array<i64: 128, 128>}, {pipeline_mode = #tpu.pipeline_mode<synchronous>, transform_indices = @transform_4, window_bounds = array<i64: 1, 128>}, {pipeline_mode = #tpu.pipeline_mode<synchronous>, transform_indices = @transform_5, window_bounds = array<i64: 128, 128>}, {pipeline_mode = #tpu.pipeline_mode<synchronous>, transform_indices = @transform_6, window_bounds = array<i64: 1, 128>}, {transform_indices = @transform_7, window_bounds = array<i64: 16, 128>}]} {
    %c0 = arith.constant 0 : index
    %c0_0 = arith.constant 0 : index
    %0 = vector.load %arg2[%c0, %c0_0] : memref<16x16xbf16, #tpu.memory_space<vmem>>, vector<16x16xbf16>
    %c0_1 = arith.constant 0 : index
    %c0_2 = arith.constant 0 : index
    %1 = vector.load %arg3[%c0_1, %c0_2] : memref<16x128xbf16, #tpu.memory_space<vmem>>, vector<16x128xbf16>
    %cst = arith.constant dense<0.000000e+00> : vector<16x128xf32>
    %2 = tpu.matmul %0, %1, %cst {dimension_numbers = #tpu.dot_dimension_numbers<[1], [0], [0], [1], [0, 0, 1, 1], [], []>} : vector<16x16xbf16>, vector<16x128xbf16>, vector<16x128xf32> -> vector<16x128xf32>
    %c0_3 = arith.constant 0 : index
    %c0_4 = arith.constant 0 : index
    %3 = vector.load %arg4[%c0_3, %c0_4] : memref<1x128xf32, #tpu.memory_space<vmem>>, vector<1x128xf32>
    %4 = vector.broadcast %3 : vector<1x128xf32> to vector<16x128xf32>
    %5 = arith.addf %2, %4 : vector<16x128xf32>
    %cst_5 = arith.constant 0.000000e+00 : f32
    %6 = vector.broadcast %cst_5 : f32 to vector<16x128xf32>
    %7 = arith.maximumf %5, %6 : vector<16x128xf32>
    %8 = arith.truncf %7 : vector<16x128xf32> to vector<16x128xbf16>
    %c0_6 = arith.constant 0 : index
    %c0_7 = arith.constant 0 : index
    %9 = vector.load %arg5[%c0_6, %c0_7] : memref<128x128xbf16, #tpu.memory_space<vmem>>, vector<128x128xbf16>
    %cst_8 = arith.constant dense<0.000000e+00> : vector<16x128xf32>
    %10 = tpu.matmul %8, %9, %cst_8 {dimension_numbers = #tpu.dot_dimension_numbers<[1], [0], [0], [1], [0, 0, 1, 1], [], []>} : vector<16x128xbf16>, vector<128x128xbf16>, vector<16x128xf32> -> vector<16x128xf32>
    %c0_9 = arith.constant 0 : index
    %c0_10 = arith.constant 0 : index
    %11 = vector.load %arg6[%c0_9, %c0_10] : memref<1x128xf32, #tpu.memory_space<vmem>>, vector<1x128xf32>
    %12 = vector.broadcast %11 : vector<1x128xf32> to vector<16x128xf32>
    %13 = arith.addf %10, %12 : vector<16x128xf32>
    %cst_11 = arith.constant 0.000000e+00 : f32
    %14 = vector.broadcast %cst_11 : f32 to vector<16x128xf32>
    %15 = arith.maximumf %13, %14 : vector<16x128xf32>
    %c16_i32 = arith.constant 16 : i32
    %16 = arith.muli %arg0, %c16_i32 : i32
    %c0_12 = arith.constant 0 : index
    %17 = memref.load %arg1[%c0_12] : memref<1xi32, #tpu.memory_space<smem>>
    %18 = tpu.iota {dimensions = array<i32: 0>} : vector<16x1xi32>
    %19 = vector.broadcast %16 : i32 to vector<16x1xi32>
    %20 = arith.addi %18, %19 : vector<16x1xi32>
    %21 = tpu.iota {dimensions = array<i32: 1>} : vector<1x128xi32>
    %c-1640531527_i32 = arith.constant -1640531527 : i32
    %22 = arith.muli %17, %c-1640531527_i32 : i32
    %23 = vector.broadcast %22 : i32 to vector<16x1xi32>
    %24 = arith.addi %20, %23 : vector<16x1xi32>
    %c16_i32_13 = arith.constant 16 : i32
    %25 = vector.broadcast %c16_i32_13 : i32 to vector<16x1xi32>
    %26 = arith.shrui %24, %25 : vector<16x1xi32>
    %27 = arith.xori %24, %26 : vector<16x1xi32>
    %c2146121005_i32 = arith.constant 2146121005 : i32
    %28 = vector.broadcast %c2146121005_i32 : i32 to vector<16x1xi32>
    %29 = arith.muli %27, %28 : vector<16x1xi32>
    %c15_i32 = arith.constant 15 : i32
    %30 = vector.broadcast %c15_i32 : i32 to vector<16x1xi32>
    %31 = arith.shrui %29, %30 : vector<16x1xi32>
    %32 = arith.xori %29, %31 : vector<16x1xi32>
    %c-2073254261_i32 = arith.constant -2073254261 : i32
    %33 = vector.broadcast %c-2073254261_i32 : i32 to vector<16x1xi32>
    %34 = arith.muli %32, %33 : vector<16x1xi32>
    %c16_i32_14 = arith.constant 16 : i32
    %35 = vector.broadcast %c16_i32_14 : i32 to vector<16x1xi32>
    %36 = arith.shrui %34, %35 : vector<16x1xi32>
    %37 = arith.xori %34, %36 : vector<16x1xi32>
    %c-2048144789_i32 = arith.constant -2048144789 : i32
    %38 = vector.broadcast %c-2048144789_i32 : i32 to vector<1x128xi32>
    %39 = arith.muli %21, %38 : vector<1x128xi32>
    %40 = vector.broadcast %17 : i32 to vector<1x128xi32>
    %41 = arith.addi %39, %40 : vector<1x128xi32>
    %c16_i32_15 = arith.constant 16 : i32
    %42 = vector.broadcast %c16_i32_15 : i32 to vector<1x128xi32>
    %43 = arith.shrui %41, %42 : vector<1x128xi32>
    %44 = arith.xori %41, %43 : vector<1x128xi32>
    %c2146121005_i32_16 = arith.constant 2146121005 : i32
    %45 = vector.broadcast %c2146121005_i32_16 : i32 to vector<1x128xi32>
    %46 = arith.muli %44, %45 : vector<1x128xi32>
    %c15_i32_17 = arith.constant 15 : i32
    %47 = vector.broadcast %c15_i32_17 : i32 to vector<1x128xi32>
    %48 = arith.shrui %46, %47 : vector<1x128xi32>
    %49 = arith.xori %46, %48 : vector<1x128xi32>
    %c-2073254261_i32_18 = arith.constant -2073254261 : i32
    %50 = vector.broadcast %c-2073254261_i32_18 : i32 to vector<1x128xi32>
    %51 = arith.muli %49, %50 : vector<1x128xi32>
    %c16_i32_19 = arith.constant 16 : i32
    %52 = vector.broadcast %c16_i32_19 : i32 to vector<1x128xi32>
    %53 = arith.shrui %51, %52 : vector<1x128xi32>
    %54 = arith.xori %51, %53 : vector<1x128xi32>
    %55 = vector.broadcast %37 : vector<16x1xi32> to vector<16x128xi32>
    %56 = vector.broadcast %54 : vector<1x128xi32> to vector<16x128xi32>
    %57 = arith.xori %55, %56 : vector<16x128xi32>
    %c16_i32_20 = arith.constant 16 : i32
    %58 = vector.broadcast %c16_i32_20 : i32 to vector<16x128xi32>
    %59 = arith.shrui %57, %58 : vector<16x128xi32>
    %60 = arith.xori %57, %59 : vector<16x128xi32>
    %c2146121005_i32_21 = arith.constant 2146121005 : i32
    %61 = vector.broadcast %c2146121005_i32_21 : i32 to vector<16x128xi32>
    %62 = arith.muli %60, %61 : vector<16x128xi32>
    %c15_i32_22 = arith.constant 15 : i32
    %63 = vector.broadcast %c15_i32_22 : i32 to vector<16x128xi32>
    %64 = arith.shrui %62, %63 : vector<16x128xi32>
    %65 = arith.xori %62, %64 : vector<16x128xi32>
    %c-2073254261_i32_23 = arith.constant -2073254261 : i32
    %66 = vector.broadcast %c-2073254261_i32_23 : i32 to vector<16x128xi32>
    %67 = arith.muli %65, %66 : vector<16x128xi32>
    %c16_i32_24 = arith.constant 16 : i32
    %68 = vector.broadcast %c16_i32_24 : i32 to vector<16x128xi32>
    %69 = arith.shrui %67, %68 : vector<16x128xi32>
    %70 = arith.xori %67, %69 : vector<16x128xi32>
    %c1288490189_i32 = arith.constant 1288490189 : i32
    %71 = vector.broadcast %c1288490189_i32 : i32 to vector<16x128xi32>
    %72 = arith.cmpi uge, %70, %71 : vector<16x128xi32>
    %cst_25 = arith.constant 0.000000e+00 : f32
    %73 = vector.broadcast %cst_25 : f32 to vector<16x128xf32>
    %74 = arith.select %72, %15, %73 : vector<16x128xi1>, vector<16x128xf32>
    %75 = arith.truncf %74 : vector<16x128xf32> to vector<16x128xbf16>
    %c0_26 = arith.constant 0 : index
    %c0_27 = arith.constant 0 : index
    %76 = vector.load %arg7[%c0_26, %c0_27] : memref<128x128xbf16, #tpu.memory_space<vmem>>, vector<128x128xbf16>
    %cst_28 = arith.constant dense<0.000000e+00> : vector<16x128xf32>
    %77 = tpu.matmul %75, %76, %cst_28 {dimension_numbers = #tpu.dot_dimension_numbers<[1], [0], [0], [1], [0, 0, 1, 1], [], []>} : vector<16x128xbf16>, vector<128x128xbf16>, vector<16x128xf32> -> vector<16x128xf32>
    %cst_29 = arith.constant 1.42857146 : f32
    %78 = vector.broadcast %cst_29 : f32 to vector<16x128xf32>
    %79 = arith.mulf %77, %78 : vector<16x128xf32>
    %c0_30 = arith.constant 0 : index
    %c0_31 = arith.constant 0 : index
    %80 = vector.load %arg8[%c0_30, %c0_31] : memref<1x128xf32, #tpu.memory_space<vmem>>, vector<1x128xf32>
    %81 = vector.broadcast %80 : vector<1x128xf32> to vector<16x128xf32>
    %82 = arith.addf %79, %81 : vector<16x128xf32>
    %c0_32 = arith.constant 0 : index
    %c0_33 = arith.constant 0 : index
    %83 = vector.load %arg9[%c0_32, %c0_33] : memref<16x128xf32, #tpu.memory_space<vmem>>, vector<16x128xf32>
    tpu.vector_store %arg9[%c0_32, %c0_33], %82 {strides = array<i32>} : memref<16x128xf32, #tpu.memory_space<vmem>>, vector<16x128xf32>,
    return
  }
  func.func @transform_0(%arg0: i32, %arg1: memref<1xi32, #tpu.memory_space<smem>>) -> (i32, i32) {
    %c0_i32 = arith.constant 0 : i32
    %c0_i32_0 = arith.constant 0 : i32
    return %arg0, %c0_i32 : i32, i32
  }
  func.func @transform_1(%arg0: i32, %arg1: memref<1xi32, #tpu.memory_space<smem>>) -> (i32, i32) {
    %c0_i32 = arith.constant 0 : i32
    %c0_i32_0 = arith.constant 0 : i32
    %c0_i32_1 = arith.constant 0 : i32
    return %c0_i32, %c0_i32_0 : i32, i32
  }
  func.func @transform_2(%arg0: i32, %arg1: memref<1xi32, #tpu.memory_space<smem>>) -> (i32, i32) {
    %c0_i32 = arith.constant 0 : i32
    %c0_i32_0 = arith.constant 0 : i32
    %c0_i32_1 = arith.constant 0 : i32
    return %c0_i32, %c0_i32_0 : i32, i32
  }
  func.func @transform_3(%arg0: i32, %arg1: memref<1xi32, #tpu.memory_space<smem>>) -> (i32, i32) {
    %c0_i32 = arith.constant 0 : i32
    %c0_i32_0 = arith.constant 0 : i32
    %c0_i32_1 = arith.constant 0 : i32
    return %c0_i32, %c0_i32_0 : i32, i32
  }
  func.func @transform_4(%arg0: i32, %arg1: memref<1xi32, #tpu.memory_space<smem>>) -> (i32, i32) {
    %c0_i32 = arith.constant 0 : i32
    %c0_i32_0 = arith.constant 0 : i32
    %c0_i32_1 = arith.constant 0 : i32
    return %c0_i32, %c0_i32_0 : i32, i32
  }
  func.func @transform_5(%arg0: i32, %arg1: memref<1xi32, #tpu.memory_space<smem>>) -> (i32, i32) {
    %c0_i32 = arith.constant 0 : i32
    %c0_i32_0 = arith.constant 0 : i32
    %c0_i32_1 = arith.constant 0 : i32
    return %c0_i32, %c0_i32_0 : i32, i32
  }
  func.func @transform_6(%arg0: i32, %arg1: memref<1xi32, #tpu.memory_space<smem>>) -> (i32, i32) {
    %c0_i32 = arith.constant 0 : i32
    %c0_i32_0 = arith.constant 0 : i32
    %c0_i32_1 = arith.constant 0 : i32
    return %c0_i32, %c0_i32_0 : i32, i32
  }
  func.func @transform_7(%arg0: i32, %arg1: memref<1xi32, #tpu.memory_space<smem>>) -> (i32, i32) {
    %c0_i32 = arith.constant 0 : i32
    %c0_i32_0 = arith.constant 0 : i32
    return %arg0, %c0_i32 : i32, i32
  }
}

</mosaic_0001>

<llo_original>
// kernel: dropout_qnetwork_forward.1
$region0: #{dropout_qnetwork_forward.1}
  #allocation0 [shape = 'u32[]', space=smem, size = 0x4, offset = 0x4, fixed_abs, tag = 'smem constant byte address 0x4 - core index']
  #allocation1 [shape = 'u32[144,128]{1,0:T(1,128)}', space=vmem, size = 0x12000, scoped, tag = 'internal scratch']
  #allocation2 [shape = 's32[1]{0}', space=sflag, size = 0x4, scoped, tag = 'scoped memory for dropout_qnetwork_forward.1']
  #allocation3 [shape = 's32[1]{0:T(128)S(6)}', space=smem, size = 0x200, scoped, tag = 'prefetched SMEM operand 0']
  %s0 = inlined_call_operand.<no memory space> [shape: s32[1], index: 0, kind: input, shape index: {}]
  %s1 = inlined_call_operand.vmem [shape: bf16[16,16], index: 1, kind: input, shape index: {}]
  %s2 = inlined_call_operand.vmem [shape: bf16[16,128], index: 2, kind: input, shape index: {}]
  %s3 = inlined_call_operand.vmem [shape: f32[1,128], index: 3, kind: input, shape index: {}]
  %s4 = inlined_call_operand.hbm [shape: bf16[128,128], index: 4, kind: input, shape index: {}]
  %s5 = inlined_call_operand.vmem [shape: f32[1,128], index: 5, kind: input, shape index: {}]
  %s6 = inlined_call_operand.hbm [shape: bf16[128,128], index: 6, kind: input, shape index: {}]
  %s7 = inlined_call_operand.vmem [shape: f32[1,128], index: 7, kind: input, shape index: {}]
  %s8 = inlined_call_operand.vmem [shape: f32[16,128], index: 8, kind: output, shape index: {}]
  %s9 = sld [smem:[#allocation0]]
  $region46: #{dropout_qnetwork_forward.1} parent=0
    _
  %s11 = ssub.s32 1, %s9
  %s12 = scalar_select 0, %s11, %s9
  %13 = sst [smem:[#allocation3]] %s0
  $region1: #{dropout_qnetwork_forward.1} parent=0
    #allocation4 [shape = 'u8[32768]{0}', space=vmem, size = 0x8000, scoped, tag = 'input window, operand 4, single buffered']
    #allocation5 [shape = 's32[1]{0}', space=sflag, size = 0x4, scoped, tag = 'scoped memory for dropout_qnetwork_forward.1']
    #allocation6 [shape = 'u8[32768]{0}', space=vmem, size = 0x8000, scoped, tag = 'input window, operand 6, single buffered']
    #allocation7 [shape = 's32[1]{0}', space=sflag, size = 0x4, scoped, tag = 'scoped memory for dropout_qnetwork_forward.1']
    %14 = vsyncpa [#allocation5], 0
    %15 = vsyncpa [#allocation7], 0
    // Predicated region
    $region2: #{dropout_qnetwork_forward.1} parent=1 // pred_check
      _
    $region3: #{dropout_qnetwork_forward.1} parent=1 // pred_check_branch
      %17 = sbr.rel (0) target = $region5
    $region4: #{dropout_qnetwork_forward.1} parent=1 // pred_region
      _
    $region5: #{dropout_qnetwork_forward.1} parent=1 // pred_fallthru
      _
    // Predicated region
    $region6: #{dropout_qnetwork_forward.1} parent=1 // pred_check
      _
    $region7: #{dropout_qnetwork_forward.1} parent=1 // pred_check_branch
      %19 = sbr.rel (0) target = $region9
    $region8: #{dropout_qnetwork_forward.1} parent=1 // pred_region
      _
    $region9: #{dropout_qnetwork_forward.1} parent=1 // pred_fallthru
      _
    // Predicated region
    $region10: #{dropout_qnetwork_forward.1} parent=1 // pred_check
      _
    $region11: #{dropout_qnetwork_forward.1} parent=1 // pred_check_branch
      %21 = sbr.rel (0) target = $region13
    $region12: #{dropout_qnetwork_forward.1} parent=1 // pred_region
      _
    $region13: #{dropout_qnetwork_forward.1} parent=1 // pred_fallthru
      _
    // Predicated region
    $region14: #{dropout_qnetwork_forward.1} parent=1 // pred_check
      _
    $region15: #{dropout_qnetwork_forward.1} parent=1 // pred_check_branch
      %23 = sbr.rel (0) target = $region17
    $region16: #{dropout_qnetwork_forward.1} parent=1 // pred_region
      %s25 = ssub.s32 1024, 1024
      %26 = vsyncadd [#allocation5], %s25
      %s27 = sshll.u32 [#allocation4], 4
      %s28 = int_to_ptr.vmem [resolvable:$true] %s27
      %33 = dma.hbm_to_vmem [thread:$0]  %s4, 1024, %s28, [#allocation5], 64, 64, 4
    $region17: #{dropout_qnetwork_forward.1} parent=1 // pred_fallthru
      _
    // Predicated region
    $region18: #{dropout_qnetwork_forward.1} parent=1 // pred_check
      _
    $region19: #{dropout_qnetwork_forward.1} parent=1 // pred_check_branch
      %35 = sbr.rel (0) target = $region21
    $region20: #{dropout_qnetwork_forward.1} parent=1 // pred_region
      _
    $region21: #{dropout_qnetwork_forward.1} parent=1 // pred_fallthru
      _
    // Predicated region
    $region22: #{dropout_qnetwork_forward.1} parent=1 // pred_check
      _
    $region23: #{dropout_qnetwork_forward.1} parent=1 // pred_check_branch
      %37 = sbr.rel (0) target = $region25
    $region24: #{dropout_qnetwork_forward.1} parent=1 // pred_region
      %s39 = ssub.s32 1024, 1024
      %40 = vsyncadd [#allocation7], %s39
      %s41 = sshll.u32 [#allocation6], 4
      %s42 = int_to_ptr.vmem [resolvable:$true] %s41
      %47 = dma.hbm_to_vmem [thread:$0]  %s6, 1024, %s42, [#allocation7], 64, 64, 4
    $region25: #{dropout_qnetwork_forward.1} parent=1 // pred_fallthru
      _
    // Predicated region
    $region26: #{dropout_qnetwork_forward.1} parent=1 // pred_check
      _
    $region27: #{dropout_qnetwork_forward.1} parent=1 // pred_check_branch
      %49 = sbr.rel (0) target = $region29
    $region28: #{dropout_qnetwork_forward.1} parent=1 // pred_region
      _
    $region29: #{dropout_qnetwork_forward.1} parent=1 // pred_fallthru
      _
    // Predicated region
    $region30: #{dropout_qnetwork_forward.1} parent=1 // pred_check
      _
    $region31: #{dropout_qnetwork_forward.1} parent=1 // pred_check_branch
      %51 = sbr.rel (0) target = $region33
    $region32: #{dropout_qnetwork_forward.1} parent=1 // pred_region
      %52 = dma.done [#allocation5], 1024
    $region33: #{dropout_qnetwork_forward.1} parent=1 // pred_fallthru
      _
    // Predicated region
    $region34: #{dropout_qnetwork_forward.1} parent=1 // pred_check
      _
    $region35: #{dropout_qnetwork_forward.1} parent=1 // pred_check_branch
      %54 = sbr.rel (0) target = $region37
    $region36: #{dropout_qnetwork_forward.1} parent=1 // pred_region
      %55 = dma.done [#allocation7], 1024
    $region37: #{dropout_qnetwork_forward.1} parent=1 // pred_fallthru
      _
    %v57 = vld [vmem:[%s1] sm:$0xf]
    %v58 = vld [vmem:[%s1 + $0x4] sm:$0xf]
    %v59 = vld [vmem:[%s2] sm:$0xf]
    %v60 = vld [vmem:[%s2 + $0x4] sm:$0xf]
    %v61 = vld [vmem:[%s3] sm:$0x1]
    %v63 = vlaneseq
    %v64 = vshrl.u32 %v63, 7
    %v65 = vsub.s32 0, %v64
    %v66 = vrot.slane %v61, %v65
    %v70 = vunpack.c.l.b16 %v57
    %v71 = vunpack.c.l.b16 %v58
    %v72 = vpack.c.b16 %v71, %v70
    %v75 = vunpack.c.l.b16 %v59
    %v76 = vunpack.c.l.b16 %v60
    %v77 = vpack.c.b16 %v76, %v75
    %vm79 = vcmask 130048
    %v81 = vsel %vm79, %v72, 0
    %83 = vmatprep.subr.bf16.mxu0 0
    %84 = vmatpush1.bf16.msra.mxu0 0
    %85 = vmatprep.subr.bf16.mxu0 0
    %86 = vmatpush1.bf16.msra.mxu0 0
    %87 = vmatprep.subr.bf16.mxu0 0
    %88 = vmatpush1.bf16.msra.mxu0 0
    %89 = vmatprep.subr.bf16.mxu0 0
    %90 = vmatpush1.bf16.msra.mxu0 0
    %91 = vmatprep.subr.bf16.mxu0 0
    %92 = vmatpush1.bf16.msra.mxu0 0
    %93 = vmatprep.subr.bf16.mxu0 0
    %94 = vmatpush1.bf16.msra.mxu0 0
    %95 = vmatprep.subr.bf16.mxu0 0
    %96 = vmatpush1.bf16.msra.mxu0 0
    %97 = vmatprep.subr.bf16.mxu0 0
    %98 = vmatpush1.bf16.msra.mxu0 %v77
    %99 = vmatprep.subr.bf16.mxu0 0
    %100 = vmatpush2.bf16.msra.mxu0 0
    %101 = vmatprep.subr.bf16.mxu0 0
    %102 = vmatpush2.bf16.msra.mxu0 0
    %103 = vmatprep.subr.bf16.mxu0 0
    %104 = vmatpush2.bf16.msra.mxu0 0
    %105 = vmatprep.subr.bf16.mxu0 0
    %106 = vmatpush2.bf16.msra.mxu0 0
    %107 = vmatprep.subr.bf16.mxu0 0
    %108 = vmatpush2.bf16.msra.mxu0 0
    %109 = vmatprep.subr.bf16.mxu0 0
    %110 = vmatpush2.bf16.msra.mxu0 0
    %111 = vmatprep.subr.bf16.mxu0 0
    %112 = vmatpush2.bf16.msra.mxu0 0
    %113 = vmatprep.subr.bf16.mxu0 0
    %114 = vmatpush2.bf16.msra.mxu0 0
    %115 = vmatprep.mubr.bf16.mxu0 0
    %116 = vmatmul.mubr.bf16.gmra.mxu0 %v81
    %v117 = vpop.f32.mrf.mxu0
    %v118 = vadd.f32 %v66, %v117
    %v119 = vpop.f32.mrf.mxu0
    %v120 = vpop.f32.mrf.mxu0
    %v121 = vadd.f32 %v66, %v120
    %v122 = vpop.f32.mrf.mxu0
    %123 = vdwg.mxu0
    %v124 = vmax.f32 %v118, 0.0
    %v125 = vmax.f32 %v121, 0.0
    %v126 = vpack.c.bf16 %v125, %v124
    %v127 = vld [vmem:[#allocation4] sm:$0xf]
    %v128 = vld [vmem:[#allocation4 + $0x4] sm:$0xf]
    %v129 = vld [vmem:[#allocation4 + $0x8] sm:$0xf]
    %v130 = vld [vmem:[#allocation4 + $0xc] sm:$0xf]
    %v131 = vld [vmem:[#allocation4 + $0x10] sm:$0xf]
    %v132 = vld [vmem:[#allocation4 + $0x14] sm:$0xf]
    %v133 = vld [vmem:[#allocation4 + $0x18] sm:$0xf]
    %v134 = vld [vmem:[#allocation4 + $0x1c] sm:$0xf]
    %v135 = vld [vmem:[#allocation4 + $0x20] sm:$0xf]
    %v136 = vld [vmem:[#allocation4 + $0x24] sm:$0xf]
    %v137 = vld [vmem:[#allocation4 + $0x28] sm:$0xf]
    %v138 = vld [vmem:[#allocation4 + $0x2c] sm:$0xf]
    %v139 = vld [vmem:[#allocation4 + $0x30] sm:$0xf]
    %v140 = vld [vmem:[#allocation4 + $0x34] sm:$0xf]
    %v141 = vld [vmem:[#allocation4 + $0x38] sm:$0xf]
    %v142 = vld [vmem:[#allocation4 + $0x3c] sm:$0xf]
    %v143 = vld [vmem:[%s5] sm:$0x1]
    %v145 = vlaneseq
    %v146 = vshrl.u32 %v145, 7
    %v147 = vsub.s32 0, %v146
    %v148 = vrot.slane %v143, %v147
    %v166 = vunpack.c.l.b16 %v127
    %v167 = vunpack.c.l.b16 %v128
    %v168 = vunpack.c.l.b16 %v129
    %v169 = vunpack.c.l.b16 %v130
    %v170 = vunpack.c.l.b16 %v131
    %v171 = vunpack.c.l.b16 %v132
    %v172 = vunpack.c.l.b16 %v133
    %v173 = vunpack.c.l.b16 %v134
    %v174 = vunpack.c.l.b16 %v135
    %v175 = vunpack.c.l.b16 %v136
    %v176 = vunpack.c.l.b16 %v137
    %v177 = vunpack.c.l.b16 %v138
    %v178 = vunpack.c.l.b16 %v139
    %v179 = vunpack.c.l.b16 %v140
    %v180 = vunpack.c.l.b16 %v141
    %v181 = vunpack.c.l.b16 %v142
    %v182 = vpack.c.b16 %v167, %v166
    %v183 = vpack.c.b16 %v169, %v168
    %v184 = vpack.c.b16 %v171, %v170
    %v185 = vpack.c.b16 %v173, %v172
    %v186 = vpack.c.b16 %v175, %v174
    %v187 = vpack.c.b16 %v177, %v176
    %v188 = vpack.c.b16 %v179, %v178
    %v189 = vpack.c.b16 %v181, %v180
    %198 = vmatprep.subr.bf16.mxu0 0
    %199 = vmatpush1.bf16.msra.mxu0 %v189
    %200 = vmatprep.subr.bf16.mxu0 0
    %201 = vmatpush1.bf16.msra.mxu0 %v188
    %202 = vmatprep.subr.bf16.mxu0 0
    %203 = vmatpush1.bf16.msra.mxu0 %v187
    %204 = vmatprep.subr.bf16.mxu0 0
    %205 = vmatpush1.bf16.msra.mxu0 %v186
    %206 = vmatprep.subr.bf16.mxu0 0
    %207 = vmatpush1.bf16.msra.mxu0 %v185
    %208 = vmatprep.subr.bf16.mxu0 0
    %209 = vmatpush1.bf16.msra.mxu0 %v184
    %210 = vmatprep.subr.bf16.mxu0 0
    %211 = vmatpush1.bf16.msra.mxu0 %v183
    %212 = vmatprep.subr.bf16.mxu0 0
    %213 = vmatpush1.bf16.msra.mxu0 %v182
    %214 = vmatprep.subr.bf16.mxu0 0
    %215 = vmatpush2.bf16.msra.mxu0 0
    %216 = vmatprep.subr.bf16.mxu0 0
    %217 = vmatpush2.bf16.msra.mxu0 0
    %218 = vmatprep.subr.bf16.mxu0 0
    %219 = vmatpush2.bf16.msra.mxu0 0
    %220 = vmatprep.subr.bf16.mxu0 0
    %221 = vmatpush2.bf16.msra.mxu0 0
    %222 = vmatprep.subr.bf16.mxu0 0
    %223 = vmatpush2.bf16.msra.mxu0 0
    %224 = vmatprep.subr.bf16.mxu0 0
    %225 = vmatpush2.bf16.msra.mxu0 0
    %226 = vmatprep.subr.bf16.mxu0 0
    %227 = vmatpush2.bf16.msra.mxu0 0
    %228 = vmatprep.subr.bf16.mxu0 0
    %229 = vmatpush2.bf16.msra.mxu0 0
    %230 = vmatprep.mubr.bf16.mxu0 0
    %231 = vmatmul.mubr.bf16.gmra.mxu0 %v126
    %v232 = vpop.f32.mrf.mxu0
    %v233 = vadd.f32 %v148, %v232
    %v234 = vpop.f32.mrf.mxu0
    %v235 = vpop.f32.mrf.mxu0
    %v236 = vadd.f32 %v148, %v235
    %v237 = vpop.f32.mrf.mxu0
    %238 = vdwg.mxu0
    %v239 = vmax.f32 %v233, 0.0
    %v240 = vmax.f32 %v236, 0.0
    %s241 = smul.u32 0, 16
    %s242 = sld [smem:[#allocation3]]
    %v243 = vlaneseq
    %v244 = vshrl.u32 %v243, 7
    %v245 = vadd.s32 %v244, 8
    %v246 = vstv %s241
    %v247 = vadd.s32 %v244, %v246
    %v248 = vadd.s32 %v245, %v246
    %v249 = vlaneseq
    %v250 = vand.u32 %v249, 127
    %s251 = smul.u32 %s242, 2654435769
    %v252 = vstv %s251
    %v253 = vadd.s32 %v247, %v252
    %v254 = vadd.s32 %v248, %v252
    %v255 = vshrl.u32 %v253, 16
    %v256 = vshrl.u32 %v254, 16
    %v257 = vxor.u32 %v253, %v255
    %v258 = vxor.u32 %v254, %v256
    %v259 = vmul.u32 %v257, 2146121005
    %v260 = vmul.u32 %v258, 2146121005
    %v261 = vshrl.u32 %v259, 15
    %v262 = vshrl.u32 %v260, 15
    %v263 = vxor.u32 %v259, %v261
    %v264 = vxor.u32 %v260, %v262
    %v265 = vmul.u32 %v263, 2221713035
    %v266 = vmul.u32 %v264, 2221713035
    %v267 = vshrl.u32 %v265, 16
    %v268 = vshrl.u32 %v266, 16
    %v269 = vxor.u32 %v265, %v267
    %v270 = vxor.u32 %v266, %v268
    %v271 = vmul.u32 %v250, 2246822507
    %v272 = vstv %s242
    %v273 = vadd.s32 %v271, %v272
    %v274 = vshrl.u32 %v273, 16
    %v275 = vxor.u32 %v273, %v274
    %v276 = vmul.u32 %v275, 2146121005
    %v277 = vshrl.u32 %v276, 15
    %v278 = vxor.u32 %v276, %v277
    %v279 = vmul.u32 %v278, 2221713035
    %v280 = vshrl.u32 %v279, 16
    %v281 = vxor.u32 %v279, %v280
    %v282 = vxor.u32 %v269, %v281
    %v283 = vxor.u32 %v270, %v281
    %v284 = vshrl.u32 %v282, 16
    %v285 = vshrl.u32 %v283, 16
    %v286 = vxor.u32 %v282, %v284
    %v287 = vxor.u32 %v283, %v285
    %v288 = vmul.u32 %v286, 2146121005
    %v289 = vmul.u32 %v287, 2146121005
    %v290 = vshrl.u32 %v288, 15
    %v291 = vshrl.u32 %v289, 15
    %v292 = vxor.u32 %v288, %v290
    %v293 = vxor.u32 %v289, %v291
    %v294 = vmul.u32 %v292, 2221713035
    %v295 = vmul.u32 %v293, 2221713035
    %v296 = vshrl.u32 %v294, 16
    %v297 = vshrl.u32 %v295, 16
    %v298 = vxor.u32 %v294, %v296
    %v299 = vxor.u32 %v295, %v297
    %vm300 = vcmp.ge.u32.totalorder %v298, 1288490189
    %vm301 = vcmp.ge.u32.totalorder %v299, 1288490189
    %v302 = vsel %vm300, %v239, 0.0
    %v303 = vsel %vm301, %v240, 0.0
    %v304 = vpack.c.bf16 %v303, %v302
    %v305 = vld [vmem:[#allocation6] sm:$0xf]
    %v306 = vld [vmem:[#allocation6 + $0x4] sm:$0xf]
    %v307 = vld [vmem:[#allocation6 + $0x8] sm:$0xf]
    %v308 = vld [vmem:[#allocation6 + $0xc] sm:$0xf]
    %v309 = vld [vmem:[#allocation6 + $0x10] sm:$0xf]
    %v310 = vld [vmem:[#allocation6 + $0x14] sm:$0xf]
    %v311 = vld [vmem:[#allocation6 + $0x18] sm:$0xf]
    %v312 = vld [vmem:[#allocation6 + $0x1c] sm:$0xf]
    %v313 = vld [vmem:[#allocation6 + $0x20] sm:$0xf]
    %v314 = vld [vmem:[#allocation6 + $0x24] sm:$0xf]
    %v315 = vld [vmem:[#allocation6 + $0x28] sm:$0xf]
    %v316 = vld [vmem:[#allocation6 + $0x2c] sm:$0xf]
    %v317 = vld [vmem:[#allocation6 + $0x30] sm:$0xf]
    %v318 = vld [vmem:[#allocation6 + $0x34] sm:$0xf]
    %v319 = vld [vmem:[#allocation6 + $0x38] sm:$0xf]
    %v320 = vld [vmem:[#allocation6 + $0x3c] sm:$0xf]
    %v337 = vunpack.c.l.b16 %v305
    %v338 = vunpack.c.l.b16 %v306
    %v339 = vunpack.c.l.b16 %v307
    %v340 = vunpack.c.l.b16 %v308
    %v341 = vunpack.c.l.b16 %v309
    %v342 = vunpack.c.l.b16 %v310
    %v343 = vunpack.c.l.b16 %v311
    %v344 = vunpack.c.l.b16 %v312
    %v345 = vunpack.c.l.b16 %v313
    %v346 = vunpack.c.l.b16 %v314
    %v347 = vunpack.c.l.b16 %v315
    %v348 = vunpack.c.l.b16 %v316
    %v349 = vunpack.c.l.b16 %v317
    %v350 = vunpack.c.l.b16 %v318
    %v351 = vunpack.c.l.b16 %v319
    %v352 = vunpack.c.l.b16 %v320
    %v353 = vpack.c.b16 %v338, %v337
    %v354 = vpack.c.b16 %v340, %v339
    %v355 = vpack.c.b16 %v342, %v341
    %v356 = vpack.c.b16 %v344, %v343
    %v357 = vpack.c.b16 %v346, %v345
    %v358 = vpack.c.b16 %v348, %v347
    %v359 = vpack.c.b16 %v350, %v349
    %v360 = vpack.c.b16 %v352, %v351
    %369 = vmatprep.subr.bf16.mxu0 0
    %370 = vmatpush1.bf16.msra.mxu0 %v360
    %371 = vmatprep.subr.bf16.mxu0 0
    %372 = vmatpush1.bf16.msra.mxu0 %v359
    %373 = vmatprep.subr.bf16.mxu0 0
    %374 = vmatpush1.bf16.msra.mxu0 %v358
    %375 = vmatprep.subr.bf16.mxu0 0
    %376 = vmatpush1.bf16.msra.mxu0 %v357
    %377 = vmatprep.subr.bf16.mxu0 0
    %378 = vmatpush1.bf16.msra.mxu0 %v356
    %379 = vmatprep.subr.bf16.mxu0 0
    %380 = vmatpush1.bf16.msra.mxu0 %v355
    %381 = vmatprep.subr.bf16.mxu0 0
    %382 = vmatpush1.bf16.msra.mxu0 %v354
    %383 = vmatprep.subr.bf16.mxu0 0
    %384 = vmatpush1.bf16.msra.mxu0 %v353
    %385 = vmatprep.subr.bf16.mxu0 0
    %386 = vmatpush2.bf16.msra.mxu0 0
    %387 = vmatprep.subr.bf16.mxu0 0
    %388 = vmatpush2.bf16.msra.mxu0 0
    %389 = vmatprep.subr.bf16.mxu0 0
    %390 = vmatpush2.bf16.msra.mxu0 0
    %391 = vmatprep.subr.bf16.mxu0 0
    %392 = vmatpush2.bf16.msra.mxu0 0
    %393 = vmatprep.subr.bf16.mxu0 0
    %394 = vmatpush2.bf16.msra.mxu0 0
    %395 = vmatprep.subr.bf16.mxu0 0
    %396 = vmatpush2.bf16.msra.mxu0 0
    %397 = vmatprep.subr.bf16.mxu0 0
    %398 = vmatpush2.bf16.msra.mxu0 0
    %399 = vmatprep.subr.bf16.mxu0 0
    %400 = vmatpush2.bf16.msra.mxu0 0
    %401 = vmatprep.mubr.bf16.mxu0 0
    %402 = vmatmul.mubr.bf16.gmra.mxu0 %v304
    %v403 = vpop.f32.mrf.mxu0
    %v404 = vadd.f32 0.0, %v403
    %v405 = vpop.f32.mrf.mxu0
    %v406 = vpop.f32.mrf.mxu0
    %v407 = vadd.f32 0.0, %v406
    %v408 = vpop.f32.mrf.mxu0
    %409 = vdwg.mxu0
    %v410 = vmul.f32 %v404, 1.4285715
    %v411 = vmul.f32 %v407, 1.4285715
    %v412 = vld [vmem:[%s7] sm:$0x1]
    %v414 = vlaneseq
    %v415 = vshrl.u32 %v414, 7
    %v416 = vsub.s32 0, %v415
    %v417 = vrot.slane %v412, %v416
    %v419 = vadd.f32 %v410, %v417
    %v420 = vadd.f32 %v411, %v417
    %421 = vst [vmem:[%s8] sm:$0xff] %v419
    %422 = vst [vmem:[%s8 + $0x8] sm:$0xff] %v420
    // Predicated region
    $region38: #{dropout_qnetwork_forward.1} parent=1 // pred_check
      _
    $region39: #{dropout_qnetwork_forward.1} parent=1 // pred_check_branch
      %424 = sbr.rel (0) target = $region41
    $region40: #{dropout_qnetwork_forward.1} parent=1 // pred_region
      _
    $region41: #{dropout_qnetwork_forward.1} parent=1 // pred_fallthru
      _
    // Predicated region
    $region42: #{dropout_qnetwork_forward.1} parent=1 // pred_check
      _
    $region43: #{dropout_qnetwork_forward.1} parent=1 // pred_check_branch
      %426 = sbr.rel (0) target = $region45
    $region44: #{dropout_qnetwork_forward.1} parent=1 // pred_region
      _
    $region45: #{dropout_qnetwork_forward.1} parent=1 // pred_fallthru
      _
    %427 = vsyncpa [#allocation5], 1
    %428 = vsyncpa [#allocation7], 1

</llo_original>
